<compile_context>
chip_gen: v6e
topology: v6e:2x2x1
jax: 0.10.0
libtpu: 0.0.40
codegen_flags: <defaults>
</compile_context>

<pallas_src>
import functools

import jax
import jax.numpy as jnp
from jax.experimental import pallas as pl
from jax.experimental.pallas import tpu as pltpu


def _round_up(x, m):
    return (x + m - 1) // m * m


def _sublane_multiple(itemsize):
    # 8 for f32, 16 for bf16, 32 for int8/fp8
    return 8 * (4 // itemsize)


def _vmem_budget_bytes():
    """~75% of physical VMEM: ~48 MiB on v7x, ~96 MiB on v5e/v6e."""
    try:
        cap = int(pltpu.get_tpu_info().vmem_capacity_bytes)
    except Exception:
        cap = 64 * 1024 * 1024  # conservative fallback (v7x-sized)
    return max(16 * 1024 * 1024, (cap * 3) // 4)


def _pick_batch_tile(B, per_batch_block_bytes, excite_bytes_per_batch,
                     target_bytes=2 * 1024 * 1024,
                     excite_cap_bytes=1 * 1024 * 1024):
    """Largest divisor of B whose block is ~<= target and whose (Bt, C, I)
    excite intermediate stays in a sane vreg/VMEM-spill range; prefer >= 2
    grid steps so both v7x TensorCores get work."""
    cap = max(1, min(target_bytes // max(per_batch_block_bytes, 1),
                     excite_cap_bytes // max(excite_bytes_per_batch, 1)))
    divs = [d for d in range(1, B + 1) if B % d == 0 and d <= cap]
    if not divs:
        return 1
    if B >= 2:
        two_step = [d for d in divs if B // d >= 2]
        if two_step:
            divs = two_step
    return max(divs)


def _pick_hw_tile(HW, C, itemsize, target_bytes):
    sub = _sublane_multiple(itemsize)
    cands = [d for d in range(128, HW + 1, 128) if HW % d == 0]
    if not cands:
        # TODO(synk): HW with no multiple-of-128 divisor (e.g. 49, 196) cannot
        # be tiled cleanly on the lane axis; fall back to the full row.
        return HW
    fit = [d for d in cands if _round_up(C, sub) * d * itemsize <= target_bytes]
    return max(fit) if fit else min(cands)


# ----------------------------- fused path ----------------------------------


def _se_fused_kernel(x_ref, wdt_ref, bd_ref, wu_ref, bu_ref, o_ref, *,
                     inv_hw, scale_in_input_dtype):
    # x_ref : (Bt, C, HW)  channels on sublanes, spatial on lanes
    # wdt_ref: (C, I) = w_down.T ; bd_ref: (1, I)
    # wu_ref : (C, I) = w_up     ; bu_ref: (C, 1)
    # o_ref : (Bt, C, HW)

    # squeeze: global average pool (lane-axis reduction), f32 accumulation
    x32 = x_ref[...].astype(jnp.float32)
    pooled = jnp.sum(x32, axis=-1, keepdims=True) * inv_hw          # (Bt, C, 1)

    # excite: two tiny FCs as broadcast-mul + reduce on the VPU/XLU.  C and I
    # are far below MXU tile size, so this avoids an M~1 matmul and its MXU
    # push/pop latency on the serialized squeeze->scale path.
    # TODO(synk): for very large C*Bt (intermediate (Bt,C,I) >> 1 MiB) switch
    # the excite to 2-D MXU dots to avoid vreg spills.
    h = jnp.sum(wdt_ref[...] * pooled, axis=1, keepdims=True)       # (Bt, 1, I)
    h = jnp.maximum(h + bd_ref[...], 0.0)                           # relu
    s = jnp.sum(wu_ref[...] * h, axis=-1, keepdims=True)            # (Bt, C, 1)
    s = s + bu_ref[...]
    s = pl.reciprocal(1.0 + jnp.exp(-s))                            # sigmoid

    # scale: re-read x from VMEM so the whole tile is not kept live in vregs
    # across the squeeze/excite phase (no spills for large tiles).
    if scale_in_input_dtype:
        o_ref[...] = x_ref[...] * s.astype(o_ref.dtype)
    else:
        o_ref[...] = (x_ref[...].astype(jnp.float32) * s).astype(o_ref.dtype)


# -------------------------- two-pass fallback -------------------------------


def _pool_kernel(x_ref, o_ref, *, inv_hw):
    # x_ref: (C, hw_t), o_ref: (C, 1) f32, resident across the HW-tile axis
    t = pl.program_id(1)

    @pl.when(t == 0)
    def _init():
        o_ref[...] = jnp.zeros_like(o_ref)

    o_ref[...] += jnp.sum(x_ref[...].astype(jnp.float32), axis=-1, keepdims=True)

    @pl.when(t == pl.num_programs(1) - 1)
    def _fin():
        o_ref[...] = o_ref[...] * inv_hw


def _scale_kernel(x_ref, s_ref, o_ref, *, scale_in_input_dtype):
    # x_ref: (C, hw_t), s_ref: (C, 1) f32, o_ref: (C, hw_t)
    if scale_in_input_dtype:
        o_ref[...] = x_ref[...] * s_ref[...].astype(o_ref.dtype)
    else:
        o_ref[...] = (x_ref[...].astype(jnp.float32) * s_ref[...]).astype(o_ref.dtype)


# ------------------------------- wrapper ------------------------------------


def se_block(inputs_nchw, w_down, b_down, w_up, b_up, *,
             force_two_pass=False, hw_tile_target_bytes=2 * 1024 * 1024):
    """SEBlock forward.
    inputs_nchw: (B, C, H, W)
    w_down: (I, C)  (PyTorch 1x1 conv weight squeezed), b_down: (I,)
    w_up:   (C, I),                                     b_up:   (C,)
    Returns (B, C, H, W)."""
    B, C, H, W = inputs_nchw.shape
    assert H == W, "SEBlock global pool assumes square spatial dims (H == W)"
    I = w_down.shape[0]
    HW = H * W

    # free reshape (NCHW-native; no transpose, no extra HBM passes)
    # TODO(synk): for badly 128-aligned small HW (49, 196) with C >= 128, an
    # in-kernel XLU transpose to put channels on lanes would restore lane
    # density; not done here.
    x = inputs_nchw.reshape(B, C, HW)
    in_dtype = inputs_nchw.dtype
    itemsize = jnp.dtype(in_dtype).itemsize
    sub = _sublane_multiple(itemsize)

    # bf16: do the wide scale multiply in bf16 (native VPU on v6e/v7x);
    # pooling stays f32.  TODO(synk): prefer the f32 path on v5e (no bf16 VPU).
    scale_native = jnp.dtype(in_dtype) == jnp.dtype(jnp.bfloat16)

    budget = _vmem_budget_bytes()

    # padded VMEM footprint of the fused path (double-buffered in + out blocks
    # plus the lane-padded weight blocks, also double-buffered)
    per_batch_block = _round_up(C, sub) * _round_up(HW, 128) * itemsize
    excite_per_batch = _round_up(C, 8) * _round_up(I, 128) * 4
    bt = _pick_batch_tile(B, per_batch_block, excite_per_batch)

    weights_vmem = 2 * 4 * (
        _round_up(C, 8) * _round_up(I, 128)      # w_down.T
        + 8 * _round_up(I, 128)                  # b_down
        + _round_up(C, 8) * _round_up(I, 128)    # w_up
        + _round_up(C, 8) * 128                  # b_up
    )
    fused_needed = 2 * 2 * bt * per_batch_block + weights_vmem + (2 << 20)
    if fused_needed > budget:
        bt = 1
        fused_needed = 2 * 2 * per_batch_block + weights_vmem + (2 << 20)

    use_fused = (not force_two_pass) and (fused_needed <= budget)

    if use_fused:
        wdt = jnp.transpose(w_down)          # (C, I)  tiny
        bd = b_down.reshape(1, I)
        wu = w_up                            # (C, I)
        bu = b_up.reshape(C, 1)

        kernel = functools.partial(_se_fused_kernel, inv_hw=1.0 / HW,
                                   scale_in_input_dtype=scale_native)
        out = pl.pallas_call(
            kernel,
            out_shape=jax.ShapeDtypeStruct((B, C, HW), in_dtype),
            grid_spec=pltpu.PrefetchScalarGridSpec(
                num_scalar_prefetch=0,
                grid=(B // bt,),
                in_specs=[
                    pl.BlockSpec((bt, C, HW), lambda b: (b, 0, 0)),  # x
                    pl.BlockSpec((C, I), lambda b: (0, 0)),          # w_down.T
                    pl.BlockSpec((1, I), lambda b: (0, 0)),          # b_down
                    pl.BlockSpec((C, I), lambda b: (0, 0)),          # w_up
                    pl.BlockSpec((C, 1), lambda b: (0, 0)),          # b_up
                ],
                out_specs=pl.BlockSpec((bt, C, HW), lambda b: (b, 0, 0)),
            ),
            compiler_params=pltpu.CompilerParams(
                dimension_semantics=("parallel",),
                vmem_limit_bytes=int(min(budget, fused_needed + (2 << 20))),
            ),
        )(x, wdt, bd, wu, bu)
        return out.reshape(B, C, H, W)

    # ---- two-pass fallback (needed when fused blocks overflow VMEM, v7x) ---
    hw_t = _pick_hw_tile(HW, C, itemsize, hw_tile_target_bytes)
    n_t = HW // hw_t

    # pass 1: HW-tiled global average pool -> (B, C, 1) f32
    pooled = pl.pallas_call(
        functools.partial(_pool_kernel, inv_hw=1.0 / HW),
        out_shape=jax.ShapeDtypeStruct((B, C, 1), jnp.float32),
        grid_spec=pltpu.PrefetchScalarGridSpec(
            num_scalar_prefetch=0,
            grid=(B, n_t),
            in_specs=[pl.BlockSpec((None, C, hw_t), lambda b, t: (b, 0, t))],
            out_specs=pl.BlockSpec((None, C, 1), lambda b, t: (b, 0, 0)),
        ),
        compiler_params=pltpu.CompilerParams(
            dimension_semantics=("parallel", "arbitrary"),
            vmem_limit_bytes=budget,
        ),
    )(x)

    # tiny excite FCs in plain JAX (negligible next to the two wide HBM passes)
    p = pooled[..., 0]                                                 # (B, C)
    h = jnp.maximum(p @ jnp.transpose(w_down).astype(jnp.float32) + b_down, 0.0)
    s = jax.nn.sigmoid(h @ jnp.transpose(w_up).astype(jnp.float32) + b_up)
    s3 = s.reshape(B, C, 1).astype(jnp.float32)

    # pass 2: HW-tiled scale
    out = pl.pallas_call(
        functools.partial(_scale_kernel, scale_in_input_dtype=scale_native),
        out_shape=jax.ShapeDtypeStruct((B, C, HW), in_dtype),
        grid_spec=pltpu.PrefetchScalarGridSpec(
            num_scalar_prefetch=0,
            grid=(B, n_t),
            in_specs=[
                pl.BlockSpec((None, C, hw_t), lambda b, t: (b, 0, t)),
                pl.BlockSpec((None, C, 1), lambda b, t: (b, 0, 0)),
            ],
            out_specs=pl.BlockSpec((None, C, hw_t), lambda b, t: (b, 0, t)),
        ),
        compiler_params=pltpu.CompilerParams(
            dimension_semantics=("parallel", "parallel"),
            vmem_limit_bytes=budget,
        ),
    )(x, s3)
    return out.reshape(B, C, H, W)


def _reference(inputs, w_down, b_down, w_up, b_up):
    # pure-JAX reference matching the PyTorch module
    pooled = jnp.mean(inputs, axis=(2, 3))                      # (B, C)
    h = jnp.maximum(pooled @ w_down.T + b_down, 0.0)            # (B, I)
    s = jax.nn.sigmoid(h @ w_up.T + b_up)                       # (B, C)
    return inputs * s[:, :, None, None]


if __name__ == "__main__":
    B, C, I, H, W = 2, 8, 4, 16, 16

    key = jax.random.PRNGKey(0)
    k_x, k_wd, k_bd, k_wu, k_bu = jax.random.split(key, 5)

    x = jax.random.normal(k_x, (B, C, H, W), dtype=jnp.float32)
    w_down = jax.random.normal(k_wd, (I, C), dtype=jnp.float32) * 0.1
    b_down = jax.random.normal(k_bd, (I,), dtype=jnp.float32) * 0.1
    w_up = jax.random.normal(k_wu, (C, I), dtype=jnp.float32) * 0.1
    b_up = jax.random.normal(k_bu, (C,), dtype=jnp.float32) * 0.1

    ref = _reference(x, w_down, b_down, w_up, b_up)

    # fused (default) path
    out = jax.block_until_ready(se_block(x, w_down, b_down, w_up, b_up))
    assert out.shape == (B, C, H, W)
    assert jnp.allclose(out, ref, atol=1e-5, rtol=1e-5)

    # two-pass fallback path (the v7x large-tile route), tiled over HW
    out2 = jax.block_until_ready(
        se_block(x, w_down, b_down, w_up, b_up,
                 force_two_pass=True, hw_tile_target_bytes=4 * 1024))
    assert out2.shape == (B, C, H, W)
    assert jnp.allclose(out2, ref, atol=1e-5, rtol=1e-5)

    print("KERNEL_OK")
</pallas_src>

<mosaic_0001>
module attributes {stable_mosaic.version = 11 : i64} {
  func.func @_se_fused_kernel(%arg0: i32, %arg1: memref<1x8x256xf32, #tpu.memory_space<vmem>>, %arg2: memref<8x4xf32, #tpu.memory_space<vmem>>, %arg3: memref<1x4xf32, #tpu.memory_space<vmem>>, %arg4: memref<8x4xf32, #tpu.memory_space<vmem>>, %arg5: memref<8x1xf32, #tpu.memory_space<vmem>>, %arg6: memref<1x8x256xf32, #tpu.memory_space<vmem>>) attributes {dimension_semantics = [#tpu.dimension_semantics<parallel>], iteration_bounds = array<i64: 2>, scalar_prefetch = 0 : i64, scratch_operands = 0 : i64, tpu.core_type = #tpu.core_type<tc>, window_params = [{transform_indices = @transform_0, window_bounds = array<i64: 1, 8, 256>}, {pipeline_mode = #tpu.pipeline_mode<synchronous>, transform_indices = @transform_1, window_bounds = array<i64: 8, 4>}, {pipeline_mode = #tpu.pipeline_mode<synchronous>, transform_indices = @transform_2, window_bounds = array<i64: 1, 4>}, {pipeline_mode = #tpu.pipeline_mode<synchronous>, transform_indices = @transform_3, window_bounds = array<i64: 8, 4>}, {pipeline_mode = #tpu.pipeline_mode<synchronous>, transform_indices = @transform_4, window_bounds = array<i64: 8, 1>}, {transform_indices = @transform_5, window_bounds = array<i64: 1, 8, 256>}]} {
    %c0 = arith.constant 0 : index
    %c0_0 = arith.constant 0 : index
    %c0_1 = arith.constant 0 : index
    %0 = vector.load %arg1[%c0, %c0_0, %c0_1] : memref<1x8x256xf32, #tpu.memory_space<vmem>>, vector<1x8x256xf32>
    %cst = arith.constant dense<0.000000e+00> : vector<1x8xf32>
    %1 = vector.multi_reduction <add>, %0, %cst [2] : vector<1x8x256xf32> to vector<1x8xf32>
    %2 = vector.shape_cast %1 : vector<1x8xf32> to vector<1x8x1xf32>
    %cst_2 = arith.constant 3.906250e-03 : f32
    %3 = vector.broadcast %cst_2 : f32 to vector<1x8x1xf32>
    %4 = arith.mulf %2, %3 : vector<1x8x1xf32>
    %c0_3 = arith.constant 0 : index
    %c0_4 = arith.constant 0 : index
    %5 = vector.load %arg2[%c0_3, %c0_4] : memref<8x4xf32, #tpu.memory_space<vmem>>, vector<8x4xf32>
    %6 = vector.shape_cast %5 : vector<8x4xf32> to vector<1x8x4xf32>
    %7 = vector.broadcast %4 : vector<1x8x1xf32> to vector<1x8x4xf32>
    %8 = arith.mulf %6, %7 : vector<1x8x4xf32>
    %cst_5 = arith.constant dense<0.000000e+00> : vector<1x4xf32>
    %9 = vector.multi_reduction <add>, %8, %cst_5 [1] : vector<1x8x4xf32> to vector<1x4xf32>
    %10 = vector.shape_cast %9 : vector<1x4xf32> to vector<1x1x4xf32>
    %c0_6 = arith.constant 0 : index
    %c0_7 = arith.constant 0 : index
    %11 = vector.load %arg3[%c0_6, %c0_7] : memref<1x4xf32, #tpu.memory_space<vmem>>, vector<1x4xf32>
    %12 = vector.shape_cast %11 : vector<1x4xf32> to vector<1x1x4xf32>
    %13 = arith.addf %10, %12 : vector<1x1x4xf32>
    %cst_8 = arith.constant 0.000000e+00 : f32
    %14 = vector.broadcast %cst_8 : f32 to vector<1x1x4xf32>
    %15 = arith.maximumf %13, %14 : vector<1x1x4xf32>
    %c0_9 = arith.constant 0 : index
    %c0_10 = arith.constant 0 : index
    %16 = vector.load %arg4[%c0_9, %c0_10] : memref<8x4xf32, #tpu.memory_space<vmem>>, vector<8x4xf32>
    %17 = vector.shape_cast %16 : vector<8x4xf32> to vector<1x8x4xf32>
    %18 = vector.broadcast %15 : vector<1x1x4xf32> to vector<1x8x4xf32>
    %19 = arith.mulf %17, %18 : vector<1x8x4xf32>
    %cst_11 = arith.constant dense<0.000000e+00> : vector<1x8xf32>
    %20 = vector.multi_reduction <add>, %19, %cst_11 [2] : vector<1x8x4xf32> to vector<1x8xf32>
    %21 = vector.shape_cast %20 : vector<1x8xf32> to vector<1x8x1xf32>
    %c0_12 = arith.constant 0 : index
    %c0_13 = arith.constant 0 : index
    %22 = vector.load %arg5[%c0_12, %c0_13] : memref<8x1xf32, #tpu.memory_space<vmem>>, vector<8x1xf32>
    %23 = vector.shape_cast %22 : vector<8x1xf32> to vector<1x8x1xf32>
    %24 = arith.addf %21, %23 : vector<1x8x1xf32>
    %cst_14 = arith.constant 0.000000e+00 : f32
    %25 = vector.broadcast %cst_14 : f32 to vector<1x8x1xf32>
    %26 = arith.subf %25, %24 : vector<1x8x1xf32>
    %27 = math.exp %26 : vector<1x8x1xf32>
    %cst_15 = arith.constant 1.000000e+00 : f32
    %28 = vector.broadcast %cst_15 : f32 to vector<1x8x1xf32>
    %29 = arith.addf %28, %27 : vector<1x8x1xf32>
    %30 = tpu.reciprocal %29 : vector<1x8x1xf32> -> vector<1x8x1xf32>
    %c0_16 = arith.constant 0 : index
    %c0_17 = arith.constant 0 : index
    %c0_18 = arith.constant 0 : index
    %31 = vector.load %arg1[%c0_16, %c0_17, %c0_18] : memref<1x8x256xf32, #tpu.memory_space<vmem>>, vector<1x8x256xf32>
    %32 = vector.broadcast %30 : vector<1x8x1xf32> to vector<1x8x256xf32>
    %33 = arith.mulf %31, %32 : vector<1x8x256xf32>
    %c0_19 = arith.constant 0 : index
    %c0_20 = arith.constant 0 : index
    %c0_21 = arith.constant 0 : index
    %34 = vector.load %arg6[%c0_19, %c0_20, %c0_21] : memref<1x8x256xf32, #tpu.memory_space<vmem>>, vector<1x8x256xf32>
    tpu.vector_store %arg6[%c0_19, %c0_20, %c0_21], %33 {strides = array<i32>} : memref<1x8x256xf32, #tpu.memory_space<vmem>>, vector<1x8x256xf32>,
    return
  }
  func.func @transform_0(%arg0: i32) -> (i32, i32, i32) {
    %c0_i32 = arith.constant 0 : i32
    %c0_i32_0 = arith.constant 0 : i32
    %c0_i32_1 = arith.constant 0 : i32
    return %arg0, %c0_i32, %c0_i32_0 : i32, i32, i32
  }
  func.func @transform_1(%arg0: i32) -> (i32, i32) {
    %c0_i32 = arith.constant 0 : i32
    %c0_i32_0 = arith.constant 0 : i32
    %c0_i32_1 = arith.constant 0 : i32
    return %c0_i32, %c0_i32_0 : i32, i32
  }
  func.func @transform_2(%arg0: i32) -> (i32, i32) {
    %c0_i32 = arith.constant 0 : i32
    %c0_i32_0 = arith.constant 0 : i32
    %c0_i32_1 = arith.constant 0 : i32
    return %c0_i32, %c0_i32_0 : i32, i32
  }
  func.func @transform_3(%arg0: i32) -> (i32, i32) {
    %c0_i32 = arith.constant 0 : i32
    %c0_i32_0 = arith.constant 0 : i32
    %c0_i32_1 = arith.constant 0 : i32
    return %c0_i32, %c0_i32_0 : i32, i32
  }
  func.func @transform_4(%arg0: i32) -> (i32, i32) {
    %c0_i32 = arith.constant 0 : i32
    %c0_i32_0 = arith.constant 0 : i32
    %c0_i32_1 = arith.constant 0 : i32
    return %c0_i32, %c0_i32_0 : i32, i32
  }
  func.func @transform_5(%arg0: i32) -> (i32, i32, i32) {
    %c0_i32 = arith.constant 0 : i32
    %c0_i32_0 = arith.constant 0 : i32
    %c0_i32_1 = arith.constant 0 : i32
    return %arg0, %c0_i32, %c0_i32_0 : i32, i32, i32
  }
}

</mosaic_0001>

<llo_original>
// kernel: tpu_custom_call.1
$region0: #{tpu_custom_call.1}
  #allocation0 [shape = 'u32[]', space=smem, size = 0x4, offset = 0x4, fixed_abs, tag = 'smem constant byte address 0x4 - core index']
  #allocation1 [shape = 'u32[144,128]{1,0:T(1,128)}', space=vmem, size = 0x12000, scoped, tag = 'internal scratch']
  %s0 = inlined_call_operand.vmem [shape: f32[2,8,256], index: 0, kind: input, shape index: {}]
  %s1 = inlined_call_operand.vmem [shape: f32[8,4], index: 1, kind: input, shape index: {}]
  %s2 = inlined_call_operand.hbm [shape: f32[1,4], index: 2, kind: input, shape index: {}]
  %s3 = inlined_call_operand.vmem [shape: f32[8,4], index: 3, kind: input, shape index: {}]
  %s4 = inlined_call_operand.vmem [shape: f32[8,1], index: 4, kind: input, shape index: {}]
  %s5 = inlined_call_operand.hbm [shape: f32[2,8,256], index: 5, kind: output, shape index: {}]
  %s6 = sld [smem:[#allocation0]]
  $region57: #{tpu_custom_call.1} parent=0
    _
  %s8 = ssub.s32 1, %s6
  %s9 = scalar_select 0, %s8, %s6
  $region1: #{tpu_custom_call.1} parent=0
    #allocation2 [shape = 'u8[512]{0}', space=vmem, size = 0x400, scoped, tag = 'input window, operand 2, single buffered']
    #allocation3 [shape = 's32[2]{0}', space=sflag, size = 0x8, scoped, tag = 'scoped memory for tpu_custom_call.1']
    #allocation4 [shape = 's32[2]{0}', space=sflag, size = 0x8, scoped, tag = 'scoped memory for tpu_custom_call.1']
    #allocation5 [shape = 'u8[16384]{0}', space=vmem, size = 0x4000, scoped, tag = 'output window, operand 0']
    %10 = vsyncpa [#allocation3], 0
    %11 = vsyncpa [#allocation4], 0
    %s12 = scalar_lea.sflag [#allocation4], 1
    %13 = vsyncpa %s12, 0
    loop: start=0, step=1, limit=4
    $region2: #{tpu_custom_call.1} parent=1 // loop_pre_header
      _
    $region3: #{tpu_custom_call.1} parent=1 // loop_header
      %s15 = sphi 0, %s19
      %p16 = scmp.ge.s32.totalorder %s15, 4
      %s25 = sphi 0, %s27
      %s28 = sphi 0, %s25
      %s29 = sphi 0, %s28
      %s45 = sphi 0, %s29
      %s49 = sphi 0, %s49
      %s51 = sphi 0, %s49
      %s52 = sphi 0, %s51
      %s66 = sphi 0, %s52
      %s70 = sphi 0, %s70
      %s72 = sphi 0, %s70
      %s73 = sphi 0, %s72
      %s87 = sphi 0, %s73
      %s91 = sphi 0, %s91
      %s93 = sphi 0, %s91
      %s94 = sphi 0, %s93
      %s108 = sphi 0, %s94
      %s112 = sphi 0, %s112
      %s114 = sphi 0, %s112
      %s115 = sphi 0, %s114
      %s129 = sphi 0, %s115
      %s135 = sphi 0, %s137
      %s138 = sphi 0, %s135
      %s139 = sphi 0, %s138
      %s155 = sphi 0, %s139
    $region4: #{tpu_custom_call.1} parent=1 // loop_header_branch
      %18 = sbr.rel (%p16) target = $region8
    $region5: #{tpu_custom_call.1} parent=1 // loop_body
      %s20 = ssub.s32 %s15, 1
      %s21 = ssub.s32 %s15, 2
      %s22 = sadd.s32 %s15, 1
      %s23 = ssub.s32 %s15, %s22
      %p24 = scmp.eq.s32.totalorder %s23, 0
      %s26 = sadd.s32 %s25, 1
      %s27 = scalar_select %p24, %s25, %s26
      %p30 = pneg %p24
      %p31 = scmp.eq.s32.totalorder %s15, 1
      %p32 = por %p30, %p31
      %p33 = scmp.ne.s32.totalorder %s25, %s28
      %p34 = scmp.eq.s32.totalorder %s15, 0
      %p35 = por %p33, %p34
      %p36 = scmp.ne.s32.totalorder %s25, %s28
      %p37 = scmp.eq.s32.totalorder %s20, 1
      %p38 = por %p36, %p37
      %p39 = scmp.ne.s32.totalorder %s28, %s29
      %p40 = scmp.eq.s32.totalorder %s20, 0
      %p41 = por %p39, %p40
      %p42 = scmp.ne.s32.totalorder %s28, %s29
      %p43 = scmp.eq.s32.totalorder %s21, 1
      %p44 = por %p42, %p43
      %p46 = scmp.ne.s32.totalorder %s29, %s45
      %p47 = scmp.eq.s32.totalorder %s21, 0
      %p48 = por %p46, %p47
      %s50 = sadd.s32 %s49, 1
      %p53 = scmp.eq.s32.totalorder %s15, 1
      %p54 = scmp.ne.s32.totalorder %s49, %s51
      %p55 = scmp.eq.s32.totalorder %s15, 0
      %p56 = por %p54, %p55
      %p57 = scmp.ne.s32.totalorder %s49, %s51
      %p58 = scmp.eq.s32.totalorder %s20, 1
      %p59 = por %p57, %p58
      %p60 = scmp.ne.s32.totalorder %s51, %s52
      %p61 = scmp.eq.s32.totalorder %s20, 0
      %p62 = por %p60, %p61
      %p63 = scmp.ne.s32.totalorder %s51, %s52
      %p64 = scmp.eq.s32.totalorder %s21, 1
      %p65 = por %p63, %p64
      %p67 = scmp.ne.s32.totalorder %s52, %s66
      %p68 = scmp.eq.s32.totalorder %s21, 0
      %p69 = por %p67, %p68
      %s71 = sadd.s32 %s70, 1
      %p74 = scmp.eq.s32.totalorder %s15, 1
      %p75 = scmp.ne.s32.totalorder %s70, %s72
      %p76 = scmp.eq.s32.totalorder %s15, 0
      %p77 = por %p75, %p76
      %p78 = scmp.ne.s32.totalorder %s70, %s72
      %p79 = scmp.eq.s32.totalorder %s20, 1
      %p80 = por %p78, %p79
      %p81 = scmp.ne.s32.totalorder %s72, %s73
      %p82 = scmp.eq.s32.totalorder %s20, 0
      %p83 = por %p81, %p82
      %p84 = scmp.ne.s32.totalorder %s72, %s73
      %p85 = scmp.eq.s32.totalorder %s21, 1
      %p86 = por %p84, %p85
      %p88 = scmp.ne.s32.totalorder %s73, %s87
      %p89 = scmp.eq.s32.totalorder %s21, 0
      %p90 = por %p88, %p89
      %s92 = sadd.s32 %s91, 1
      %p95 = scmp.eq.s32.totalorder %s15, 1
      %p96 = scmp.ne.s32.totalorder %s91, %s93
      %p97 = scmp.eq.s32.totalorder %s15, 0
      %p98 = por %p96, %p97
      %p99 = scmp.ne.s32.totalorder %s91, %s93
      %p100 = scmp.eq.s32.totalorder %s20, 1
      %p101 = por %p99, %p100
      %p102 = scmp.ne.s32.totalorder %s93, %s94
      %p103 = scmp.eq.s32.totalorder %s20, 0
      %p104 = por %p102, %p103
      %p105 = scmp.ne.s32.totalorder %s93, %s94
      %p106 = scmp.eq.s32.totalorder %s21, 1
      %p107 = por %p105, %p106
      %p109 = scmp.ne.s32.totalorder %s94, %s108
      %p110 = scmp.eq.s32.totalorder %s21, 0
      %p111 = por %p109, %p110
      %s113 = sadd.s32 %s112, 1
      %p116 = scmp.eq.s32.totalorder %s15, 1
      %p117 = scmp.ne.s32.totalorder %s112, %s114
      %p118 = scmp.eq.s32.totalorder %s15, 0
      %p119 = por %p117, %p118
      %p120 = scmp.ne.s32.totalorder %s112, %s114
      %p121 = scmp.eq.s32.totalorder %s20, 1
      %p122 = por %p120, %p121
      %p123 = scmp.ne.s32.totalorder %s114, %s115
      %p124 = scmp.eq.s32.totalorder %s20, 0
      %p125 = por %p123, %p124
      %p126 = scmp.ne.s32.totalorder %s114, %s115
      %p127 = scmp.eq.s32.totalorder %s21, 1
      %p128 = por %p126, %p127
      %p130 = scmp.ne.s32.totalorder %s115, %s129
      %p131 = scmp.eq.s32.totalorder %s21, 0
      %p132 = por %p130, %p131
      %s133 = ssub.s32 %s15, %s22
      %p134 = scmp.eq.s32.totalorder %s133, 0
      %s136 = sadd.s32 %s135, 1
      %s137 = scalar_select %p134, %s135, %s136
      %p140 = pneg %p134
      %p141 = scmp.eq.s32.totalorder %s15, 1
      %p142 = por %p140, %p141
      %p143 = scmp.ne.s32.totalorder %s135, %s138
      %p144 = scmp.eq.s32.totalorder %s15, 0
      %p145 = por %p143, %p144
      %p146 = scmp.ne.s32.totalorder %s135, %s138
      %p147 = scmp.eq.s32.totalorder %s20, 1
      %p148 = por %p146, %p147
      %p149 = scmp.ne.s32.totalorder %s138, %s139
      %p150 = scmp.eq.s32.totalorder %s20, 0
      %p151 = por %p149, %p150
      %p152 = scmp.ne.s32.totalorder %s138, %s139
      %p153 = scmp.eq.s32.totalorder %s21, 1
      %p154 = por %p152, %p153
      %p156 = scmp.ne.s32.totalorder %s139, %s155
      %p157 = scmp.eq.s32.totalorder %s21, 0
      %p158 = por %p156, %p157
      %p159 = scmp.le.s32.totalorder 1, %s15
      %p160 = scmp.lt.s32.totalorder %s15, 3
      %p161 = pnand %p159, %p160
      %p162 = pneg %p161
      // Predicated region
      $region9: #{tpu_custom_call.1} parent=5 // pred_check
        _
      $region10: #{tpu_custom_call.1} parent=5 // pred_check_branch
        %164 = sbr.rel (%p161) target = $region12
      $region11: #{tpu_custom_call.1} parent=5 // pred_region
        %s165 = ssub.s32 %s15, 1
        // Predicated region
        $region13: #{tpu_custom_call.1} parent=11 // pred_check
          %p166 = pneg %p62
        $region14: #{tpu_custom_call.1} parent=11 // pred_check_branch
          %168 = sbr.rel (%p166) target = $region16
        $region15: #{tpu_custom_call.1} parent=11 // pred_region
          _
        $region16: #{tpu_custom_call.1} parent=11 // pred_fallthru
          _
        // Predicated region
        $region17: #{tpu_custom_call.1} parent=11 // pred_check
          %p169 = pneg %p83
        $region18: #{tpu_custom_call.1} parent=11 // pred_check_branch
          %171 = sbr.rel (%p169) target = $region20
        $region19: #{tpu_custom_call.1} parent=11 // pred_region
          %s173 = ssub.s32 16, 16
          %174 = vsyncadd [#allocation3], %s173
          %s176 = sshll.u32 [#allocation2], 4
          %s177 = int_to_ptr.vmem [resolvable:$true] %s176
          %179 = dma.hbm_to_vmem [thread:$0]  %s2, 16, %s177, [#allocation3]
        $region20: #{tpu_custom_call.1} parent=11 // pred_fallthru
          _
        // Predicated region
        $region21: #{tpu_custom_call.1} parent=11 // pred_check
          %p180 = pneg %p104
        $region22: #{tpu_custom_call.1} parent=11 // pred_check_branch
          %182 = sbr.rel (%p180) target = $region24
        $region23: #{tpu_custom_call.1} parent=11 // pred_region
          _
        $region24: #{tpu_custom_call.1} parent=11 // pred_fallthru
          _
        // Predicated region
        $region25: #{tpu_custom_call.1} parent=11 // pred_check
          %p183 = pneg %p125
        $region26: #{tpu_custom_call.1} parent=11 // pred_check_branch
          %185 = sbr.rel (%p183) target = $region28
        $region27: #{tpu_custom_call.1} parent=11 // pred_region
          _
        $region28: #{tpu_custom_call.1} parent=11 // pred_fallthru
          _
      $region12: #{tpu_custom_call.1} parent=5 // pred_fallthru
        _
      %p186 = scmp.lt.s32.totalorder %s15, 2
      // Predicated region
      $region29: #{tpu_custom_call.1} parent=5 // pred_check
        %p187 = pneg %p186
      $region30: #{tpu_custom_call.1} parent=5 // pred_check_branch
        %189 = sbr.rel (%p187) target = $region32
      $region31: #{tpu_custom_call.1} parent=5 // pred_region
        // Predicated region
        $region33: #{tpu_custom_call.1} parent=31 // pred_check
          %p190 = pneg %p35
        $region34: #{tpu_custom_call.1} parent=31 // pred_check_branch
          %192 = sbr.rel (%p190) target = $region36
        $region35: #{tpu_custom_call.1} parent=31 // pred_region
          %p193 = scmp.lt.s32.totalorder %s15, 1
          %s194 = scalar_select %p193, %s15, 1
          %s195 = smul.addr %s194, 2
          %s196 = smul.addr %s195, 8
          %s197 = scalar_lea.vmem %s0, %s196
        $region36: #{tpu_custom_call.1} parent=31 // pred_fallthru
          _
      $region32: #{tpu_custom_call.1} parent=5 // pred_fallthru
        _
      %p198 = scmp.le.s32.totalorder 1, %s15
      %p199 = scmp.lt.s32.totalorder %s15, 3
      %p200 = pnand %p198, %p199
      %p201 = pneg %p200
      // Predicated region
      $region37: #{tpu_custom_call.1} parent=5 // pred_check
        _
      $region38: #{tpu_custom_call.1} parent=5 // pred_check_branch
        %203 = sbr.rel (%p200) target = $region40
      $region39: #{tpu_custom_call.1} parent=5 // pred_region
        %s204 = ssub.s32 %s15, 1
        // Predicated region
        $region41: #{tpu_custom_call.1} parent=39 // pred_check
          %p205 = pneg %p83
        $region42: #{tpu_custom_call.1} parent=39 // pred_check_branch
          %207 = sbr.rel (%p205) target = $region44
        $region43: #{tpu_custom_call.1} parent=39 // pred_region
          %208 = dma.done [#allocation3], 16
        $region44: #{tpu_custom_call.1} parent=39 // pred_fallthru
          _
        %p209 = scmp.lt.s32.totalorder %s20, 1
        %s210 = scalar_select %p209, %s20, 1
        %s211 = smul.addr %s210, 2
        %s212 = smul.addr %s211, 8
        %s213 = scalar_lea.vmem %s0, %s212
        %p214 = pneg %p41
        %p215 = pneg %p38
        %p216 = pneg %p62
        %p217 = pneg %p59
        %p218 = pneg %p83
        %p219 = pneg %p80
        %p220 = pneg %p104
        %p221 = pneg %p101
        %p222 = pneg %p125
        %p223 = pneg %p122
        %p224 = pneg %p151
        %p225 = pneg %p148
        %s226 = sand.u32 %s138, 1
        %s227 = scalar_lea.sflag [#allocation4], %s226
        %s228 = sand.u32 %s138, 1
        %s229 = smul.addr %s228, 16
        %s230 = scalar_lea.vmem [#allocation5], %s229
        %p231 = scmp.lt.s32.totalorder %s20, 1
        %s232 = scalar_select %p231, %s20, 1
        %s233 = smul.addr %s232, 2
        %s234 = smul.addr %s233, 8
        %s235 = scalar_lea.vmem %s0, %s234
        %v236 = vld [vmem:[%s235] sm:$0xff]
        %v237 = vld [vmem:[%s235 + $0x8] sm:$0xff]
        %v238 = vadd.f32 %v236, %v237
        %239 = vadd.xlane.f32.xlu0 %v238
        %v240 = vpop.xlane.xlu0 %239
        %v241 = vmul.f32 %v240, 0.00390625
        %v242 = vld [vmem:[%s1] sm:$0xff]
        %v243 = vmul.f32 %v242, %v241
        %vm244 = vcmask 31744
        %v245 = vsel %vm244, %v243, 0.0
        %v246 = vrot.slane %v245, 4
        %v247 = vadd.f32 %v245, %v246
        %v248 = vrot.slane %v247, 2
        %v249 = vadd.f32 %v247, %v248
        %v250 = vrot.slane %v249, 1
        %v251 = vadd.f32 %v249, %v250
        %v252 = vld [vmem:[#allocation2] sm:$0x1]
        %v253 = vadd.f32 %v251, %v252
        %v254 = vmax.f32 %v253, 0.0
        %v255 = vld [vmem:[%s3] sm:$0xff]
        %v256 = vlaneseq
        %v257 = vshrl.u32 %v256, 7
        %v258 = vsub.s32 0, %v257
        %v259 = vrot.slane %v254, %v258
        %v260 = vmul.f32 %v255, %v259
        %v261 = vsel %vm244, %v260, 0.0
        %262 = vadd.xlane.f32.xlu0 %v261
        %v263 = vpop.xlane.xlu0 %262
        %v264 = vld [vmem:[%s4] sm:$0xff]
        %v265 = vadd.f32 %v263, %v264
        %v266 = vsub.f32 0.0, %v265
        %v267 = vmul.f32 %v266, 1.442695
        %v268 = vpow.pop %v267
        %v269 = vadd.f32 %v268, 1.0
        %v270 = vrcp.pop %v269
        %272 = vset.pattern.permute.xlu0 0
        %273 = vperm.xlu0 %272, %v270
        %v274 = vpop.permute.xlu0 %273
        %v276 = vmul.f32 %v236, %v274
        %v277 = vmul.f32 %v237, %v274
        %278 = vst [vmem:[%s230] sm:$0xff] %v276
        %279 = vst [vmem:[%s230 + $0x8] sm:$0xff] %v277
        %s280 = sand.u32 %s138, 1
        %s281 = scalar_lea.sflag [#allocation4], %s280
        %s282 = sand.u32 %s138, 1
        %s283 = smul.addr %s282, 16
        %s284 = scalar_lea.vmem [#allocation5], %s283
        // Predicated region
        $region45: #{tpu_custom_call.1} parent=39 // pred_check
          %p285 = pneg %p148
        $region46: #{tpu_custom_call.1} parent=39 // pred_check_branch
          %287 = sbr.rel (%p285) target = $region48
        $region47: #{tpu_custom_call.1} parent=39 // pred_region
          %s289 = ssub.s32 256, 256
          %290 = vsyncadd %s281, %s289
          %s291 = smul.addr %s20, 2
          %s292 = smul.addr %s291, 128
          %s293 = scalar_lea.hbm %s5, %s292
          %s295 = sshll.u32 %s284, 4
          %s296 = int_to_ptr.vmem [resolvable:$true] %s295
          %298 = dma.vmem_to_hbm [thread:$0]  %s296, 256, %s293, %s281
        $region48: #{tpu_custom_call.1} parent=39 // pred_fallthru
          _
      $region40: #{tpu_custom_call.1} parent=5 // pred_fallthru
        _
      %p299 = scmp.le.s32.totalorder 2, %s15
      // Predicated region
      $region49: #{tpu_custom_call.1} parent=5 // pred_check
        %p300 = pneg %p299
      $region50: #{tpu_custom_call.1} parent=5 // pred_check_branch
        %302 = sbr.rel (%p300) target = $region52
      $region51: #{tpu_custom_call.1} parent=5 // pred_region
        %s303 = ssub.s32 %s15, 2
        // Predicated region
        $region53: #{tpu_custom_call.1} parent=51 // pred_check
          %p304 = pneg %p154
        $region54: #{tpu_custom_call.1} parent=51 // pred_check_branch
          %306 = sbr.rel (%p304) target = $region56
        $region55: #{tpu_custom_call.1} parent=51 // pred_region
          %s307 = sand.u32 %s139, 1
          %s308 = scalar_lea.sflag [#allocation4], %s307
          %s309 = sand.u32 %s139, 1
          %s310 = smul.addr %s309, 16
          %s311 = scalar_lea.vmem [#allocation5], %s310
          %312 = dma.done %s308, 256
        $region56: #{tpu_custom_call.1} parent=51 // pred_fallthru
          _
      $region52: #{tpu_custom_call.1} parent=5 // pred_fallthru
        _
    $region6: #{tpu_custom_call.1} parent=1 // loop_footer
      %s19 = sadd.s32 1, %s15
    $region7: #{tpu_custom_call.1} parent=1 // loop_footer_branch
      %14 = sbr.rel target = $region3
    $region8: #{tpu_custom_call.1} parent=1 // loop_exit
      _
    %313 = vsyncpa [#allocation3], 1
    %s314 = scalar_lea.sflag [#allocation3], 1
    %315 = vsyncpa %s314, 1
    %316 = vsyncpa [#allocation4], 1
    %s317 = scalar_lea.sflag [#allocation4], 1
    %318 = vsyncpa %s317, 1

</llo_original>
